<compile_context>
chip_gen: v7x
topology: tpu7x:2x2x1
jax: 0.10.0
libtpu: 0.0.40
codegen_flags: <defaults>
</compile_context>

<pallas_src>
import math
from functools import partial

import jax
import jax.numpy as jnp
from jax.experimental import pallas as pl
from jax.experimental.pallas import tpu as pltpu


# ----------------------------------------------------------------------------
# Config (small, synthetic — mirrors the fields the module reads)
# ----------------------------------------------------------------------------
class Config:
    min_level = 3
    max_level = 5
    num_levels = 3
    num_scales = 3
    aspect_ratios = (0.5, 1.0, 2.0)
    num_classes = 8
    anchor_scale = 4.0
    image_size = 16


MULTISCALE = [1.0, 1.1, 0.9]
GS = 32            # grid-size rounding used by scale_img
PAD_VALUE = 0.447
LANE = 128
SUBLANE = 8
VMEM_LIMIT = 32 * 1024 * 1024   # explicit scoped VMEM, safe on v5e/v6e/v7x


def _round_up(x, m):
    return (x + m - 1) // m * m


# ----------------------------------------------------------------------------
# Trace-time operator construction (tiny arrays, pure jnp)
# ----------------------------------------------------------------------------
def _bilinear_matrix(in_size, out_size, pad_size):
    """Rows j < out_size hold the 2-tap bilinear weights (PyTorch
    align_corners=False formula); rows >= out_size are zero (the pad region is
    supplied by an additive constant folded into the head offset)."""
    j = jnp.arange(pad_size, dtype=jnp.float32)
    src = (j + 0.5) * (in_size / out_size) - 0.5
    src = jnp.maximum(src, 0.0)
    i0 = jnp.floor(src).astype(jnp.int32)
    i0 = jnp.minimum(i0, in_size - 1)
    i1 = jnp.minimum(i0 + 1, in_size - 1)
    w1 = src - i0.astype(jnp.float32)
    w0 = 1.0 - w1
    rows = jnp.arange(pad_size)
    m = jnp.zeros((pad_size, in_size), jnp.float32)
    m = m.at[rows, i0].add(w0).at[rows, i1].add(w1)
    valid = (rows < out_size)[:, None]
    return jnp.where(valid, m, 0.0).astype(jnp.float32)


def pack_head_params(params, num_classes, num_anchors, scale):
    """Concatenate cls+box weights with 1/scale folded into the box rows
    (implements box_out /= scale exactly), pad K to a multiple of 8 sublanes,
    transpose to (Kp, C), stack over levels.  Returns f32 (bf16 cast later)."""
    kc = num_anchors * num_classes
    kb = num_anchors * 4
    kp = _round_up(kc + kb, SUBLANE)          # 112 for the toy config
    inv = 1.0 / scale
    wts, biases = [], []
    for wc, bc, wb, bb in params:
        w = jnp.concatenate([wc, wb * inv], axis=1)          # (C, kc+kb)
        w = jnp.pad(w, ((0, 0), (0, kp - (kc + kb))))
        wts.append(w.T)                                      # (Kp, C)
        b = jnp.concatenate([bc[0], bb[0] * inv])
        biases.append(jnp.pad(b, (0, kp - (kc + kb))))       # (Kp,)
    return jnp.stack(wts), jnp.stack(biases), kc, kb, kp     # f32


def build_operators(H, W, scale, strides, w_stack_f32, b_stack):
    """Per-level Kronecker resize/pad/subsample operators, concatenated along
    the pixel axis (ragged packing), plus the fused additive offset
    (bias + sum_c(W) * pad_const) and per-level column masks."""
    sh, sw = int(H * scale), int(W * scale)
    hp = math.ceil(H * scale / GS) * GS
    wp = math.ceil(W * scale / GS) * GS
    wh = _bilinear_matrix(H, sh, hp)          # (Hp, H)
    ww = _bilinear_matrix(W, sw, wp)          # (Wp, W)
    rows = jnp.arange(hp)[:, None]
    cols = jnp.arange(wp)[None, :]
    pad_img = jnp.where((rows >= sh) | (cols >= sw),
                        jnp.float32(PAD_VALUE), jnp.float32(0.0))   # (Hp, Wp)

    L = len(strides)
    kp = w_stack_f32.shape[1]
    mts, offs, shapes = [], [], []
    total = 0
    for l, s in enumerate(strides):
        wh_s, ww_s = wh[::s], ww[::s]                         # (Hl,H), (Wl,W)
        hl, wl = wh_s.shape[0], ww_s.shape[0]
        mts.append(jnp.kron(wh_s, ww_s).T)                    # (H*W, Hl*Wl)
        pad_l = pad_img[::s, ::s].reshape(-1)                 # (Hl*Wl,)
        wsum = jnp.sum(w_stack_f32[l], axis=1)                # (Kp,)
        offs.append(b_stack[l][:, None] + wsum[:, None] * pad_l[None, :])
        shapes.append((hl, wl))
        total += hl * wl

    n_pad = _round_up(max(total, LANE), LANE)                 # 84 -> 128
    m_all = jnp.pad(jnp.concatenate(mts, axis=1),
                    ((0, 0), (0, n_pad - total))).astype(jnp.bfloat16)
    off_all = jnp.pad(jnp.concatenate(offs, axis=1),
                      ((0, 0), (0, n_pad - total))).astype(jnp.float32)
    mask = jnp.zeros((L, 1, n_pad), jnp.float32)
    col = 0
    for l, (hl, wl) in enumerate(shapes):
        mask = mask.at[l, 0, col:col + hl * wl].set(1.0)
        col += hl * wl
    return m_all, off_all, mask, shapes, n_pad


# ----------------------------------------------------------------------------
# The one fused kernel: resize+pad+subsample (Kronecker, K=H*W) -> per-level
# 1x1-conv heads -> /scale + bias (folded into weights/offset).  Grid = batch.
# ----------------------------------------------------------------------------
def _fused_kernel(num_levels, x_ref, m_ref, w_ref, off_ref, mask_ref, o_ref):
    # x_ref:   (1, C, H*W)  f32 image (one batch element)
    # m_ref:   (H*W, Np)    bf16 concatenated Kronecker operators (all levels)
    # w_ref:   (L, Kp, C)   bf16 fused cls+box head weights (1/scale folded)
    # off_ref: (Kp, Np)     f32  bias + wsum*pad offset (1/scale folded)
    # mask_ref:(L, 1, Np)   f32  per-level column selector
    # o_ref:   (1, Kp, Np)  f32  fused head output slab (lane-dense)
    xb = x_ref[0].astype(jnp.bfloat16)                                 # (C, HW)
    feat = jnp.dot(xb, m_ref[...],
                   preferred_element_type=jnp.float32)                 # (C, Np)
    featb = feat.astype(jnp.bfloat16)
    acc = off_ref[...]                                                 # (Kp, Np)
    for l in range(num_levels):                                        # unrolled
        y = jnp.dot(w_ref[l], featb,
                    preferred_element_type=jnp.float32)                # (Kp, Np)
        acc = acc + y * mask_ref[l]
    o_ref[0] = acc


def fused_forward(x, m_all, w_stack_bf16, off_all, mask, n_pad, kp):
    B, C, H, W = x.shape
    HW = H * W
    L = w_stack_bf16.shape[0]
    x_flat = x.reshape(B, C, HW)          # free contiguous reshape, lane-dense
    # TODO(synk): at production EfficientDet resolutions, tile the H*W / pixel
    # axes (row blocks) so the per-step VMEM footprint stays < v7x's 64 MiB.
    return pl.pallas_call(
        partial(_fused_kernel, L),
        out_shape=jax.ShapeDtypeStruct((B, kp, n_pad), jnp.float32),
        grid=(B,),
        in_specs=[
            pl.BlockSpec((1, C, HW), lambda b: (b, 0, 0)),
            pl.BlockSpec((HW, n_pad), lambda b: (0, 0)),        # resident
            pl.BlockSpec((L, kp, C), lambda b: (0, 0, 0)),      # resident
            pl.BlockSpec((kp, n_pad), lambda b: (0, 0)),        # resident
            pl.BlockSpec((L, 1, n_pad), lambda b: (0, 0, 0)),   # resident
        ],
        out_specs=pl.BlockSpec((1, kp, n_pad), lambda b: (b, 0, 0)),
        compiler_params=pltpu.CompilerParams(
            dimension_semantics=("parallel",),
            vmem_limit_bytes=VMEM_LIMIT),
    )(x_flat, m_all, w_stack_bf16, off_all, mask)


# ----------------------------------------------------------------------------
# Parameter init (deterministic, synthetic head)
# ----------------------------------------------------------------------------
def init_params(key, config, in_channels):
    num_anchors = config.num_scales * len(config.aspect_ratios)
    kc = num_anchors * config.num_classes
    kb = num_anchors * 4
    params = []
    for _ in range(config.num_levels):
        key, k1, k2 = jax.random.split(key, 3)
        wc = 0.1 * jax.random.normal(k1, (in_channels, kc), jnp.float32)
        wb = 0.1 * jax.random.normal(k2, (in_channels, kb), jnp.float32)
        bc = jnp.zeros((1, kc), jnp.float32)
        bb = jnp.zeros((1, kb), jnp.float32)
        params.append((wc, bc, wb, bb))
    return params


# ----------------------------------------------------------------------------
# Forward (DetBenchTrainMultiScaleV2.forward)
# ----------------------------------------------------------------------------
def det_bench_forward(x, gt_boxes, gt_labels, params, config, scale_idx=1):
    # TODO(synk): np.random.randint(len(multiscale)) replaced by a deterministic
    # index for reproducibility.
    scale = MULTISCALE[scale_idx]
    num_anchors = config.num_scales * len(config.aspect_ratios)
    strides = [2 ** (l + 2) for l in range(config.num_levels)]   # 4, 8, 16

    # TODO(synk): the real EfficientDet backbone/BiFPN (self.model) is not
    # provided; replaced by strided subsampling of the scaled/padded image +
    # per-level 1x1-conv heads, all fused into one Pallas kernel.
    w_stack, b_stack, kc, kb, kp = pack_head_params(
        params, config.num_classes, num_anchors, scale)
    m_all, off_all, mask, lvl_shapes, n_pad = build_operators(
        x.shape[2], x.shape[3], scale, strides, w_stack, b_stack)

    out = fused_forward(x, m_all, w_stack.astype(jnp.bfloat16),
                        off_all, mask, n_pad, kp)          # (B, Kp, Npad)

    # Split the lane-dense slab into per-level NCHW outputs (PyTorch model
    # output convention) — tiny slices + contiguous reshapes, no transposes.
    B = x.shape[0]
    class_out, box_out, col = [], [], 0
    for hl, wl in lvl_shapes:
        n = hl * wl
        o_l = out[:, :, col:col + n]
        class_out.append(o_l[:, :kc, :].reshape(B, kc, hl, wl))
        box_out.append(o_l[:, kc:kc + kb, :].reshape(B, kb, hl, wl))
        col += n

    # TODO(synk): AnchorLabeler.label_anchors and DetectionLoss sources are not
    # given in the reference module; returning head outputs instead of the loss.
    del gt_boxes, gt_labels
    return class_out, box_out


# ----------------------------------------------------------------------------
# Pure-JAX f32 reference (scale_img + strided features + heads + box/scale)
# ----------------------------------------------------------------------------
def reference_forward(x, params, config, scale):
    B, C, H, W = x.shape
    strides = [2 ** (l + 2) for l in range(config.num_levels)]
    sh, sw = int(H * scale), int(W * scale)
    hp = math.ceil(H * scale / GS) * GS
    wp = math.ceil(W * scale / GS) * GS
    wh = _bilinear_matrix(H, sh, hp)
    ww = _bilinear_matrix(W, sw, wp)
    img = jnp.einsum('pr,bcrq->bcpq', wh, x)
    img = jnp.einsum('bcpq,sq->bcps', img, ww)
    rows = jnp.arange(hp)[:, None]
    cols = jnp.arange(wp)[None, :]
    img = img + jnp.where((rows >= sh) | (cols >= sw), PAD_VALUE, 0.0)
    cls_o, box_o = [], []
    for l, s in enumerate(strides):
        feat = img[:, :, ::s, ::s]
        wc, bc, wb, bb = params[l]
        c = jnp.einsum('bchw,ck->bkhw', feat, wc) + bc[0][None, :, None, None]
        b = jnp.einsum('bchw,ck->bkhw', feat, wb) + bb[0][None, :, None, None]
        cls_o.append(c)
        box_o.append(b / scale)
    return cls_o, box_o


# ----------------------------------------------------------------------------
if __name__ == "__main__":
    config = Config()
    key = jax.random.PRNGKey(0)
    kx, kp_, kgb, kgl = jax.random.split(key, 4)

    B, C, H, W = 2, 4, 16, 16
    x = jax.random.normal(kx, (B, C, H, W), jnp.float32)
    gt_boxes = jax.random.uniform(kgb, (B, 5, 4), jnp.float32) * config.image_size
    gt_labels = jax.random.randint(kgl, (B, 5), 0, config.num_classes)

    params = init_params(kp_, config, in_channels=C)

    class_out, box_out = det_bench_forward(
        x, gt_boxes, gt_labels, params, config, scale_idx=1)
    jax.block_until_ready((class_out, box_out))

    # sanity: per-level shapes (NCHW, like the PyTorch model outputs)
    num_anchors = config.num_scales * len(config.aspect_ratios)
    assert class_out[0].shape == (B, num_anchors * config.num_classes, 8, 8)
    assert box_out[0].shape == (B, num_anchors * 4, 8, 8)
    assert class_out[2].shape == (B, num_anchors * config.num_classes, 2, 2)
    assert box_out[2].shape == (B, num_anchors * 4, 2, 2)

    # sanity: numerics vs pure-f32 JAX reference (scale_img pad + /scale + bias
    # folding all validated here; bf16 MXU operands -> loose tolerance)
    ref_cls, ref_box = reference_forward(x, params, config, MULTISCALE[1])
    jax.block_until_ready((ref_cls, ref_box))
    for a, r in zip(class_out + box_out, ref_cls + ref_box):
        assert bool(jnp.allclose(a, r, atol=0.08, rtol=0.05)), (
            "max abs diff %.4f" % float(jnp.max(jnp.abs(a - r))))

    print("KERNEL_OK")
</pallas_src>

<mosaic_0001>
module attributes {stable_mosaic.version = 11 : i64} {
  func.func @_fused_kernel(%arg0: i32, %arg1: memref<1x4x256xf32, #tpu.memory_space<vmem>>, %arg2: memref<256x128xbf16, #tpu.memory_space<vmem>>, %arg3: memref<3x112x4xbf16, #tpu.memory_space<vmem>>, %arg4: memref<112x128xf32, #tpu.memory_space<vmem>>, %arg5: memref<3x1x128xf32, #tpu.memory_space<vmem>>, %arg6: memref<1x112x128xf32, #tpu.memory_space<vmem>>) attributes {dimension_semantics = [#tpu.dimension_semantics<parallel>], iteration_bounds = array<i64: 2>, scalar_prefetch = 0 : i64, scratch_operands = 0 : i64, tpu.core_type = #tpu.core_type<tc>, window_params = [{transform_indices = @transform_0, window_bounds = array<i64: 1, 4, 256>}, {pipeline_mode = #tpu.pipeline_mode<synchronous>, transform_indices = @transform_1, window_bounds = array<i64: 256, 128>}, {pipeline_mode = #tpu.pipeline_mode<synchronous>, transform_indices = @transform_2, window_bounds = array<i64: 3, 112, 4>}, {pipeline_mode = #tpu.pipeline_mode<synchronous>, transform_indices = @transform_3, window_bounds = array<i64: 112, 128>}, {pipeline_mode = #tpu.pipeline_mode<synchronous>, transform_indices = @transform_4, window_bounds = array<i64: 3, 1, 128>}, {transform_indices = @transform_5, window_bounds = array<i64: 1, 112, 128>}]} {
    %c0 = arith.constant 0 : index
    %c0_0 = arith.constant 0 : index
    %c0_1 = arith.constant 0 : index
    %0 = vector.load %arg1[%c0, %c0_0, %c0_1] : memref<1x4x256xf32, #tpu.memory_space<vmem>>, vector<1x4x256xf32>
    %1 = vector.shape_cast %0 : vector<1x4x256xf32> to vector<4x256xf32>
    %2 = arith.truncf %1 : vector<4x256xf32> to vector<4x256xbf16>
    %c0_2 = arith.constant 0 : index
    %c0_3 = arith.constant 0 : index
    %3 = vector.load %arg2[%c0_2, %c0_3] : memref<256x128xbf16, #tpu.memory_space<vmem>>, vector<256x128xbf16>
    %cst = arith.constant dense<0.000000e+00> : vector<4x128xf32>
    %4 = tpu.matmul %2, %3, %cst {dimension_numbers = #tpu.dot_dimension_numbers<[1], [0], [0], [1], [0, 0, 1, 1], [], []>} : vector<4x256xbf16>, vector<256x128xbf16>, vector<4x128xf32> -> vector<4x128xf32>
    %5 = arith.truncf %4 : vector<4x128xf32> to vector<4x128xbf16>
    %c0_4 = arith.constant 0 : index
    %c0_5 = arith.constant 0 : index
    %6 = vector.load %arg4[%c0_4, %c0_5] : memref<112x128xf32, #tpu.memory_space<vmem>>, vector<112x128xf32>
    %c0_6 = arith.constant 0 : index
    %c0_7 = arith.constant 0 : index
    %c0_8 = arith.constant 0 : index
    %7 = vector.load %arg3[%c0_6, %c0_7, %c0_8] : memref<3x112x4xbf16, #tpu.memory_space<vmem>>, vector<1x112x4xbf16>
    %8 = vector.shape_cast %7 : vector<1x112x4xbf16> to vector<112x4xbf16>
    %cst_9 = arith.constant dense<0.000000e+00> : vector<112x128xf32>
    %9 = tpu.matmul %8, %5, %cst_9 {dimension_numbers = #tpu.dot_dimension_numbers<[1], [0], [0], [1], [0, 0, 1, 1], [], []>} : vector<112x4xbf16>, vector<4x128xbf16>, vector<112x128xf32> -> vector<112x128xf32>
    %c0_10 = arith.constant 0 : index
    %c0_11 = arith.constant 0 : index
    %c0_12 = arith.constant 0 : index
    %10 = vector.load %arg5[%c0_10, %c0_11, %c0_12] : memref<3x1x128xf32, #tpu.memory_space<vmem>>, vector<1x1x128xf32>
    %11 = vector.shape_cast %10 : vector<1x1x128xf32> to vector<1x128xf32>
    %12 = vector.broadcast %11 : vector<1x128xf32> to vector<112x128xf32>
    %13 = arith.mulf %9, %12 : vector<112x128xf32>
    %14 = arith.addf %6, %13 : vector<112x128xf32>
    %c1 = arith.constant 1 : index
    %c0_13 = arith.constant 0 : index
    %c0_14 = arith.constant 0 : index
    %15 = vector.load %arg3[%c1, %c0_13, %c0_14] : memref<3x112x4xbf16, #tpu.memory_space<vmem>>, vector<1x112x4xbf16>
    %16 = vector.shape_cast %15 : vector<1x112x4xbf16> to vector<112x4xbf16>
    %cst_15 = arith.constant dense<0.000000e+00> : vector<112x128xf32>
    %17 = tpu.matmul %16, %5, %cst_15 {dimension_numbers = #tpu.dot_dimension_numbers<[1], [0], [0], [1], [0, 0, 1, 1], [], []>} : vector<112x4xbf16>, vector<4x128xbf16>, vector<112x128xf32> -> vector<112x128xf32>
    %c1_16 = arith.constant 1 : index
    %c0_17 = arith.constant 0 : index
    %c0_18 = arith.constant 0 : index
    %18 = vector.load %arg5[%c1_16, %c0_17, %c0_18] : memref<3x1x128xf32, #tpu.memory_space<vmem>>, vector<1x1x128xf32>
    %19 = vector.shape_cast %18 : vector<1x1x128xf32> to vector<1x128xf32>
    %20 = vector.broadcast %19 : vector<1x128xf32> to vector<112x128xf32>
    %21 = arith.mulf %17, %20 : vector<112x128xf32>
    %22 = arith.addf %14, %21 : vector<112x128xf32>
    %c2 = arith.constant 2 : index
    %c0_19 = arith.constant 0 : index
    %c0_20 = arith.constant 0 : index
    %23 = vector.load %arg3[%c2, %c0_19, %c0_20] : memref<3x112x4xbf16, #tpu.memory_space<vmem>>, vector<1x112x4xbf16>
    %24 = vector.shape_cast %23 : vector<1x112x4xbf16> to vector<112x4xbf16>
    %cst_21 = arith.constant dense<0.000000e+00> : vector<112x128xf32>
    %25 = tpu.matmul %24, %5, %cst_21 {dimension_numbers = #tpu.dot_dimension_numbers<[1], [0], [0], [1], [0, 0, 1, 1], [], []>} : vector<112x4xbf16>, vector<4x128xbf16>, vector<112x128xf32> -> vector<112x128xf32>
    %c2_22 = arith.constant 2 : index
    %c0_23 = arith.constant 0 : index
    %c0_24 = arith.constant 0 : index
    %26 = vector.load %arg5[%c2_22, %c0_23, %c0_24] : memref<3x1x128xf32, #tpu.memory_space<vmem>>, vector<1x1x128xf32>
    %27 = vector.shape_cast %26 : vector<1x1x128xf32> to vector<1x128xf32>
    %28 = vector.broadcast %27 : vector<1x128xf32> to vector<112x128xf32>
    %29 = arith.mulf %25, %28 : vector<112x128xf32>
    %30 = arith.addf %22, %29 : vector<112x128xf32>
    %c0_25 = arith.constant 0 : index
    %c0_26 = arith.constant 0 : index
    %c0_27 = arith.constant 0 : index
    %31 = vector.load %arg6[%c0_25, %c0_26, %c0_27] : memref<1x112x128xf32, #tpu.memory_space<vmem>>, vector<1x112x128xf32>
    %32 = vector.shape_cast %31 : vector<1x112x128xf32> to vector<112x128xf32>
    %33 = vector.shape_cast %30 : vector<112x128xf32> to vector<1x112x128xf32>
    tpu.vector_store %arg6[%c0_25, %c0_26, %c0_27], %33 {strides = array<i32>} : memref<1x112x128xf32, #tpu.memory_space<vmem>>, vector<1x112x128xf32>,
    return
  }
  func.func @transform_0(%arg0: i32) -> (i32, i32, i32) {
    %c0_i32 = arith.constant 0 : i32
    %c0_i32_0 = arith.constant 0 : i32
    %c0_i32_1 = arith.constant 0 : i32
    return %arg0, %c0_i32, %c0_i32_0 : i32, i32, i32
  }
  func.func @transform_1(%arg0: i32) -> (i32, i32) {
    %c0_i32 = arith.constant 0 : i32
    %c0_i32_0 = arith.constant 0 : i32
    %c0_i32_1 = arith.constant 0 : i32
    return %c0_i32, %c0_i32_0 : i32, i32
  }
  func.func @transform_2(%arg0: i32) -> (i32, i32, i32) {
    %c0_i32 = arith.constant 0 : i32
    %c0_i32_0 = arith.constant 0 : i32
    %c0_i32_1 = arith.constant 0 : i32
    %c0_i32_2 = arith.constant 0 : i32
    return %c0_i32, %c0_i32_0, %c0_i32_1 : i32, i32, i32
  }
  func.func @transform_3(%arg0: i32) -> (i32, i32) {
    %c0_i32 = arith.constant 0 : i32
    %c0_i32_0 = arith.constant 0 : i32
    %c0_i32_1 = arith.constant 0 : i32
    return %c0_i32, %c0_i32_0 : i32, i32
  }
  func.func @transform_4(%arg0: i32) -> (i32, i32, i32) {
    %c0_i32 = arith.constant 0 : i32
    %c0_i32_0 = arith.constant 0 : i32
    %c0_i32_1 = arith.constant 0 : i32
    %c0_i32_2 = arith.constant 0 : i32
    return %c0_i32, %c0_i32_0, %c0_i32_1 : i32, i32, i32
  }
  func.func @transform_5(%arg0: i32) -> (i32, i32, i32) {
    %c0_i32 = arith.constant 0 : i32
    %c0_i32_0 = arith.constant 0 : i32
    %c0_i32_1 = arith.constant 0 : i32
    return %arg0, %c0_i32, %c0_i32_0 : i32, i32, i32
  }
}

</mosaic_0001>

<llo_original>
// kernel: tpu_custom_call.1
$region0: #{tpu_custom_call.1}
  #allocation0 [shape = 'u32[]', space=smem, size = 0x4, offset = 0x4, fixed_abs, tag = 'smem constant byte address 0x4 - core index']
  #allocation1 [shape = 'u32[144,128]{1,0:T(1,128)}', space=vmem, size = 0x12000, scoped, tag = 'internal scratch']
  %s0 = inlined_call_operand.vmem [shape: f32[2,4,256], index: 0, kind: input, shape index: {}]
  %s1 = inlined_call_operand.vmem [shape: bf16[256,128], index: 1, kind: input, shape index: {}]
  %s2 = inlined_call_operand.vmem [shape: bf16[3,112,4], index: 2, kind: input, shape index: {}]
  %s3 = inlined_call_operand.hbm [shape: f32[112,128], index: 3, kind: input, shape index: {}]
  %s4 = inlined_call_operand.vmem [shape: f32[3,1,128], index: 4, kind: input, shape index: {}]
  %s5 = inlined_call_operand.hbm [shape: f32[2,112,128], index: 5, kind: output, shape index: {}]
  %s6 = sld [smem:[#allocation0]]
  $region57: #{tpu_custom_call.1} parent=0
    _
  %s8 = ssub.s32 1, %s6
  %s9 = scalar_select 0, %s8, %s6
  $region1: #{tpu_custom_call.1} parent=0
    #allocation2 [shape = 'u8[57344]{0}', space=vmem, size = 0xe000, scoped, tag = 'input window, operand 3, single buffered']
    #allocation3 [shape = 's32[2]{0}', space=sflag, size = 0x8, scoped, tag = 'scoped memory for tpu_custom_call.1']
    #allocation4 [shape = 's32[2]{0}', space=sflag, size = 0x8, scoped, tag = 'scoped memory for tpu_custom_call.1']
    #allocation5 [shape = 'u8[114688]{0}', space=vmem, size = 0x1c000, scoped, tag = 'output window, operand 0']
    %10 = vsyncpa [#allocation3], 0
    %11 = vsyncpa [#allocation4], 0
    %s12 = scalar_lea.sflag [#allocation4], 1
    %13 = vsyncpa %s12, 0
    loop: start=0, step=1, limit=4
    $region2: #{tpu_custom_call.1} parent=1 // loop_pre_header
      _
    $region3: #{tpu_custom_call.1} parent=1 // loop_header
      %s15 = sphi 0, %s19
      %p16 = scmp.ge.s32.totalorder %s15, 4
      %s25 = sphi 0, %s27
      %s28 = sphi 0, %s25
      %s29 = sphi 0, %s28
      %s45 = sphi 0, %s29
      %s49 = sphi 0, %s49
      %s51 = sphi 0, %s49
      %s52 = sphi 0, %s51
      %s66 = sphi 0, %s52
      %s70 = sphi 0, %s70
      %s72 = sphi 0, %s70
      %s73 = sphi 0, %s72
      %s87 = sphi 0, %s73
      %s91 = sphi 0, %s91
      %s93 = sphi 0, %s91
      %s94 = sphi 0, %s93
      %s108 = sphi 0, %s94
      %s112 = sphi 0, %s112
      %s114 = sphi 0, %s112
      %s115 = sphi 0, %s114
      %s129 = sphi 0, %s115
      %s135 = sphi 0, %s137
      %s138 = sphi 0, %s135
      %s139 = sphi 0, %s138
      %s155 = sphi 0, %s139
    $region4: #{tpu_custom_call.1} parent=1 // loop_header_branch
      %18 = sbr.rel (%p16) target = $region8
    $region5: #{tpu_custom_call.1} parent=1 // loop_body
      %s20 = ssub.s32 %s15, 1
      %s21 = ssub.s32 %s15, 2
      %s22 = sadd.s32 %s15, 1
      %s23 = ssub.s32 %s15, %s22
      %p24 = scmp.eq.s32.totalorder %s23, 0
      %s26 = sadd.s32 %s25, 1
      %s27 = scalar_select %p24, %s25, %s26
      %p30 = pneg %p24
      %p31 = scmp.eq.s32.totalorder %s15, 1
      %p32 = por %p30, %p31
      %p33 = scmp.ne.s32.totalorder %s25, %s28
      %p34 = scmp.eq.s32.totalorder %s15, 0
      %p35 = por %p33, %p34
      %p36 = scmp.ne.s32.totalorder %s25, %s28
      %p37 = scmp.eq.s32.totalorder %s20, 1
      %p38 = por %p36, %p37
      %p39 = scmp.ne.s32.totalorder %s28, %s29
      %p40 = scmp.eq.s32.totalorder %s20, 0
      %p41 = por %p39, %p40
      %p42 = scmp.ne.s32.totalorder %s28, %s29
      %p43 = scmp.eq.s32.totalorder %s21, 1
      %p44 = por %p42, %p43
      %p46 = scmp.ne.s32.totalorder %s29, %s45
      %p47 = scmp.eq.s32.totalorder %s21, 0
      %p48 = por %p46, %p47
      %s50 = sadd.s32 %s49, 1
      %p53 = scmp.eq.s32.totalorder %s15, 1
      %p54 = scmp.ne.s32.totalorder %s49, %s51
      %p55 = scmp.eq.s32.totalorder %s15, 0
      %p56 = por %p54, %p55
      %p57 = scmp.ne.s32.totalorder %s49, %s51
      %p58 = scmp.eq.s32.totalorder %s20, 1
      %p59 = por %p57, %p58
      %p60 = scmp.ne.s32.totalorder %s51, %s52
      %p61 = scmp.eq.s32.totalorder %s20, 0
      %p62 = por %p60, %p61
      %p63 = scmp.ne.s32.totalorder %s51, %s52
      %p64 = scmp.eq.s32.totalorder %s21, 1
      %p65 = por %p63, %p64
      %p67 = scmp.ne.s32.totalorder %s52, %s66
      %p68 = scmp.eq.s32.totalorder %s21, 0
      %p69 = por %p67, %p68
      %s71 = sadd.s32 %s70, 1
      %p74 = scmp.eq.s32.totalorder %s15, 1
      %p75 = scmp.ne.s32.totalorder %s70, %s72
      %p76 = scmp.eq.s32.totalorder %s15, 0
      %p77 = por %p75, %p76
      %p78 = scmp.ne.s32.totalorder %s70, %s72
      %p79 = scmp.eq.s32.totalorder %s20, 1
      %p80 = por %p78, %p79
      %p81 = scmp.ne.s32.totalorder %s72, %s73
      %p82 = scmp.eq.s32.totalorder %s20, 0
      %p83 = por %p81, %p82
      %p84 = scmp.ne.s32.totalorder %s72, %s73
      %p85 = scmp.eq.s32.totalorder %s21, 1
      %p86 = por %p84, %p85
      %p88 = scmp.ne.s32.totalorder %s73, %s87
      %p89 = scmp.eq.s32.totalorder %s21, 0
      %p90 = por %p88, %p89
      %s92 = sadd.s32 %s91, 1
      %p95 = scmp.eq.s32.totalorder %s15, 1
      %p96 = scmp.ne.s32.totalorder %s91, %s93
      %p97 = scmp.eq.s32.totalorder %s15, 0
      %p98 = por %p96, %p97
      %p99 = scmp.ne.s32.totalorder %s91, %s93
      %p100 = scmp.eq.s32.totalorder %s20, 1
      %p101 = por %p99, %p100
      %p102 = scmp.ne.s32.totalorder %s93, %s94
      %p103 = scmp.eq.s32.totalorder %s20, 0
      %p104 = por %p102, %p103
      %p105 = scmp.ne.s32.totalorder %s93, %s94
      %p106 = scmp.eq.s32.totalorder %s21, 1
      %p107 = por %p105, %p106
      %p109 = scmp.ne.s32.totalorder %s94, %s108
      %p110 = scmp.eq.s32.totalorder %s21, 0
      %p111 = por %p109, %p110
      %s113 = sadd.s32 %s112, 1
      %p116 = scmp.eq.s32.totalorder %s15, 1
      %p117 = scmp.ne.s32.totalorder %s112, %s114
      %p118 = scmp.eq.s32.totalorder %s15, 0
      %p119 = por %p117, %p118
      %p120 = scmp.ne.s32.totalorder %s112, %s114
      %p121 = scmp.eq.s32.totalorder %s20, 1
      %p122 = por %p120, %p121
      %p123 = scmp.ne.s32.totalorder %s114, %s115
      %p124 = scmp.eq.s32.totalorder %s20, 0
      %p125 = por %p123, %p124
      %p126 = scmp.ne.s32.totalorder %s114, %s115
      %p127 = scmp.eq.s32.totalorder %s21, 1
      %p128 = por %p126, %p127
      %p130 = scmp.ne.s32.totalorder %s115, %s129
      %p131 = scmp.eq.s32.totalorder %s21, 0
      %p132 = por %p130, %p131
      %s133 = ssub.s32 %s15, %s22
      %p134 = scmp.eq.s32.totalorder %s133, 0
      %s136 = sadd.s32 %s135, 1
      %s137 = scalar_select %p134, %s135, %s136
      %p140 = pneg %p134
      %p141 = scmp.eq.s32.totalorder %s15, 1
      %p142 = por %p140, %p141
      %p143 = scmp.ne.s32.totalorder %s135, %s138
      %p144 = scmp.eq.s32.totalorder %s15, 0
      %p145 = por %p143, %p144
      %p146 = scmp.ne.s32.totalorder %s135, %s138
      %p147 = scmp.eq.s32.totalorder %s20, 1
      %p148 = por %p146, %p147
      %p149 = scmp.ne.s32.totalorder %s138, %s139
      %p150 = scmp.eq.s32.totalorder %s20, 0
      %p151 = por %p149, %p150
      %p152 = scmp.ne.s32.totalorder %s138, %s139
      %p153 = scmp.eq.s32.totalorder %s21, 1
      %p154 = por %p152, %p153
      %p156 = scmp.ne.s32.totalorder %s139, %s155
      %p157 = scmp.eq.s32.totalorder %s21, 0
      %p158 = por %p156, %p157
      %p159 = scmp.le.s32.totalorder 1, %s15
      %p160 = scmp.lt.s32.totalorder %s15, 3
      %p161 = pnand %p159, %p160
      %p162 = pneg %p161
      // Predicated region
      $region9: #{tpu_custom_call.1} parent=5 // pred_check
        _
      $region10: #{tpu_custom_call.1} parent=5 // pred_check_branch
        %164 = sbr.rel (%p161) target = $region12
      $region11: #{tpu_custom_call.1} parent=5 // pred_region
        %s165 = ssub.s32 %s15, 1
        // Predicated region
        $region13: #{tpu_custom_call.1} parent=11 // pred_check
          %p166 = pneg %p62
        $region14: #{tpu_custom_call.1} parent=11 // pred_check_branch
          %168 = sbr.rel (%p166) target = $region16
        $region15: #{tpu_custom_call.1} parent=11 // pred_region
          _
        $region16: #{tpu_custom_call.1} parent=11 // pred_fallthru
          _
        // Predicated region
        $region17: #{tpu_custom_call.1} parent=11 // pred_check
          %p169 = pneg %p83
        $region18: #{tpu_custom_call.1} parent=11 // pred_check_branch
          %171 = sbr.rel (%p169) target = $region20
        $region19: #{tpu_custom_call.1} parent=11 // pred_region
          _
        $region20: #{tpu_custom_call.1} parent=11 // pred_fallthru
          _
        // Predicated region
        $region21: #{tpu_custom_call.1} parent=11 // pred_check
          %p172 = pneg %p104
        $region22: #{tpu_custom_call.1} parent=11 // pred_check_branch
          %174 = sbr.rel (%p172) target = $region24
        $region23: #{tpu_custom_call.1} parent=11 // pred_region
          %s176 = ssub.s32 1792, 1792
          %177 = vsyncadd [#allocation3], %s176
          %s178 = sshll.u32 [#allocation2], 4
          %s179 = int_to_ptr.vmem [resolvable:$true] %s178
          %184 = dma.hbm_to_vmem [thread:$0]  %s3, 1792, %s179, [#allocation3], 128, 128, 8
        $region24: #{tpu_custom_call.1} parent=11 // pred_fallthru
          _
        // Predicated region
        $region25: #{tpu_custom_call.1} parent=11 // pred_check
          %p185 = pneg %p125
        $region26: #{tpu_custom_call.1} parent=11 // pred_check_branch
          %187 = sbr.rel (%p185) target = $region28
        $region27: #{tpu_custom_call.1} parent=11 // pred_region
          _
        $region28: #{tpu_custom_call.1} parent=11 // pred_fallthru
          _
      $region12: #{tpu_custom_call.1} parent=5 // pred_fallthru
        _
      %p188 = scmp.lt.s32.totalorder %s15, 2
      // Predicated region
      $region29: #{tpu_custom_call.1} parent=5 // pred_check
        %p189 = pneg %p188
      $region30: #{tpu_custom_call.1} parent=5 // pred_check_branch
        %191 = sbr.rel (%p189) target = $region32
      $region31: #{tpu_custom_call.1} parent=5 // pred_region
        // Predicated region
        $region33: #{tpu_custom_call.1} parent=31 // pred_check
          %p192 = pneg %p35
        $region34: #{tpu_custom_call.1} parent=31 // pred_check_branch
          %194 = sbr.rel (%p192) target = $region36
        $region35: #{tpu_custom_call.1} parent=31 // pred_region
          %p195 = scmp.lt.s32.totalorder %s15, 1
          %s196 = scalar_select %p195, %s15, 1
          %s197 = smul.addr %s196, 2
          %s198 = smul.addr %s197, 4
          %s199 = scalar_lea.vmem %s0, %s198
        $region36: #{tpu_custom_call.1} parent=31 // pred_fallthru
          _
      $region32: #{tpu_custom_call.1} parent=5 // pred_fallthru
        _
      %p200 = scmp.le.s32.totalorder 1, %s15
      %p201 = scmp.lt.s32.totalorder %s15, 3
      %p202 = pnand %p200, %p201
      %p203 = pneg %p202
      // Predicated region
      $region37: #{tpu_custom_call.1} parent=5 // pred_check
        _
      $region38: #{tpu_custom_call.1} parent=5 // pred_check_branch
        %205 = sbr.rel (%p202) target = $region40
      $region39: #{tpu_custom_call.1} parent=5 // pred_region
        %s206 = ssub.s32 %s15, 1
        // Predicated region
        $region41: #{tpu_custom_call.1} parent=39 // pred_check
          %p207 = pneg %p104
        $region42: #{tpu_custom_call.1} parent=39 // pred_check_branch
          %209 = sbr.rel (%p207) target = $region44
        $region43: #{tpu_custom_call.1} parent=39 // pred_region
          %210 = dma.done [#allocation3], 1792
        $region44: #{tpu_custom_call.1} parent=39 // pred_fallthru
          _
        %p211 = scmp.lt.s32.totalorder %s20, 1
        %s212 = scalar_select %p211, %s20, 1
        %s213 = smul.addr %s212, 2
        %s214 = smul.addr %s213, 4
        %s215 = scalar_lea.vmem %s0, %s214
        %p216 = pneg %p41
        %p217 = pneg %p38
        %p218 = pneg %p62
        %p219 = pneg %p59
        %p220 = pneg %p83
        %p221 = pneg %p80
        %p222 = pneg %p104
        %p223 = pneg %p101
        %p224 = pneg %p125
        %p225 = pneg %p122
        %p226 = pneg %p151
        %p227 = pneg %p148
        %s228 = sand.u32 %s138, 1
        %s229 = scalar_lea.sflag [#allocation4], %s228
        %s230 = sand.u32 %s138, 1
        %s231 = smul.addr %s230, 112
        %s232 = scalar_lea.vmem [#allocation5], %s231
        %p233 = scmp.lt.s32.totalorder %s20, 1
        %s234 = scalar_select %p233, %s20, 1
        %s235 = smul.addr %s234, 2
        %s236 = smul.addr %s235, 4
        %s237 = scalar_lea.vmem %s0, %s236
        %v239 = vld [vmem:[%s237] sm:$0xff]
        %v241 = vcombine.high %v239, %v239
        %v243 = vpack.c.bf16 %v239, %v239
        %v244 = vpack.c.bf16 %v241, %v241
        %v245 = vld [vmem:[%s1] sm:$0xf]
        %v246 = vld [vmem:[%s1 + $0x4] sm:$0xf]
        %v247 = vld [vmem:[%s1 + $0x8] sm:$0xf]
        %v248 = vld [vmem:[%s1 + $0xc] sm:$0xf]
        %v249 = vld [vmem:[%s1 + $0x10] sm:$0xf]
        %v250 = vld [vmem:[%s1 + $0x14] sm:$0xf]
        %v251 = vld [vmem:[%s1 + $0x18] sm:$0xf]
        %v252 = vld [vmem:[%s1 + $0x1c] sm:$0xf]
        %v253 = vld [vmem:[%s1 + $0x20] sm:$0xf]
        %v254 = vld [vmem:[%s1 + $0x24] sm:$0xf]
        %v255 = vld [vmem:[%s1 + $0x28] sm:$0xf]
        %v256 = vld [vmem:[%s1 + $0x2c] sm:$0xf]
        %v257 = vld [vmem:[%s1 + $0x30] sm:$0xf]
        %v258 = vld [vmem:[%s1 + $0x34] sm:$0xf]
        %v259 = vld [vmem:[%s1 + $0x38] sm:$0xf]
        %v260 = vld [vmem:[%s1 + $0x3c] sm:$0xf]
        %v261 = vld [vmem:[%s1 + $0x40] sm:$0xf]
        %v262 = vld [vmem:[%s1 + $0x44] sm:$0xf]
        %v263 = vld [vmem:[%s1 + $0x48] sm:$0xf]
        %v264 = vld [vmem:[%s1 + $0x4c] sm:$0xf]
        %v265 = vld [vmem:[%s1 + $0x50] sm:$0xf]
        %v266 = vld [vmem:[%s1 + $0x54] sm:$0xf]
        %v267 = vld [vmem:[%s1 + $0x58] sm:$0xf]
        %v268 = vld [vmem:[%s1 + $0x5c] sm:$0xf]
        %v269 = vld [vmem:[%s1 + $0x60] sm:$0xf]
        %v270 = vld [vmem:[%s1 + $0x64] sm:$0xf]
        %v271 = vld [vmem:[%s1 + $0x68] sm:$0xf]
        %v272 = vld [vmem:[%s1 + $0x6c] sm:$0xf]
        %v273 = vld [vmem:[%s1 + $0x70] sm:$0xf]
        %v274 = vld [vmem:[%s1 + $0x74] sm:$0xf]
        %v275 = vld [vmem:[%s1 + $0x78] sm:$0xf]
        %v276 = vld [vmem:[%s1 + $0x7c] sm:$0xf]
        %v309 = vunpack.c.l.b16 %v245
        %v310 = vunpack.c.l.b16 %v246
        %v311 = vunpack.c.l.b16 %v247
        %v312 = vunpack.c.l.b16 %v248
        %v313 = vunpack.c.l.b16 %v249
        %v314 = vunpack.c.l.b16 %v250
        %v315 = vunpack.c.l.b16 %v251
        %v316 = vunpack.c.l.b16 %v252
        %v317 = vunpack.c.l.b16 %v253
        %v318 = vunpack.c.l.b16 %v254
        %v319 = vunpack.c.l.b16 %v255
        %v320 = vunpack.c.l.b16 %v256
        %v321 = vunpack.c.l.b16 %v257
        %v322 = vunpack.c.l.b16 %v258
        %v323 = vunpack.c.l.b16 %v259
        %v324 = vunpack.c.l.b16 %v260
        %v325 = vunpack.c.l.b16 %v261
        %v326 = vunpack.c.l.b16 %v262
        %v327 = vunpack.c.l.b16 %v263
        %v328 = vunpack.c.l.b16 %v264
        %v329 = vunpack.c.l.b16 %v265
        %v330 = vunpack.c.l.b16 %v266
        %v331 = vunpack.c.l.b16 %v267
        %v332 = vunpack.c.l.b16 %v268
        %v333 = vunpack.c.l.b16 %v269
        %v334 = vunpack.c.l.b16 %v270
        %v335 = vunpack.c.l.b16 %v271
        %v336 = vunpack.c.l.b16 %v272
        %v337 = vunpack.c.l.b16 %v273
        %v338 = vunpack.c.l.b16 %v274
        %v339 = vunpack.c.l.b16 %v275
        %v340 = vunpack.c.l.b16 %v276
        %v341 = vpack.c.b16 %v310, %v309
        %v342 = vpack.c.b16 %v312, %v311
        %v343 = vpack.c.b16 %v314, %v313
        %v344 = vpack.c.b16 %v316, %v315
        %v345 = vpack.c.b16 %v318, %v317
        %v346 = vpack.c.b16 %v320, %v319
        %v347 = vpack.c.b16 %v322, %v321
        %v348 = vpack.c.b16 %v324, %v323
        %v349 = vpack.c.b16 %v326, %v325
        %v350 = vpack.c.b16 %v328, %v327
        %v351 = vpack.c.b16 %v330, %v329
        %v352 = vpack.c.b16 %v332, %v331
        %v353 = vpack.c.b16 %v334, %v333
        %v354 = vpack.c.b16 %v336, %v335
        %v355 = vpack.c.b16 %v338, %v337
        %v356 = vpack.c.b16 %v340, %v339
        %373 = vmatprep.subr.bf16.mxu0 0
        %374 = vmatpush1.bf16.msra.mxu0 %v341
        %375 = vmatprep.subr.bf16.mxu0 0
        %376 = vmatpush1.bf16.msra.mxu0 %v342
        %377 = vmatprep.subr.bf16.mxu0 0
        %378 = vmatpush1.bf16.msra.mxu0 %v343
        %379 = vmatprep.subr.bf16.mxu0 0
        %380 = vmatpush1.bf16.msra.mxu0 %v344
        %381 = vmatprep.subr.bf16.mxu0 0
        %382 = vmatpush1.bf16.msra.mxu0 %v345
        %383 = vmatprep.subr.bf16.mxu0 0
        %384 = vmatpush1.bf16.msra.mxu0 %v346
        %385 = vmatprep.subr.bf16.mxu0 0
        %386 = vmatpush1.bf16.msra.mxu0 %v347
        %387 = vmatprep.subr.bf16.mxu0 0
        %388 = vmatpush1.bf16.msra.mxu0 %v348
        %389 = vmatprep.subr.bf16.mxu0 0
        %390 = vmatpush1.bf16.msra.mxu0 %v349
        %391 = vmatprep.subr.bf16.mxu0 0
        %392 = vmatpush1.bf16.msra.mxu0 %v350
        %393 = vmatprep.subr.bf16.mxu0 0
        %394 = vmatpush1.bf16.msra.mxu0 %v351
        %395 = vmatprep.subr.bf16.mxu0 0
        %396 = vmatpush1.bf16.msra.mxu0 %v352
        %397 = vmatprep.subr.bf16.mxu0 0
        %398 = vmatpush1.bf16.msra.mxu0 %v353
        %399 = vmatprep.subr.bf16.mxu0 0
        %400 = vmatpush1.bf16.msra.mxu0 %v354
        %401 = vmatprep.subr.bf16.mxu0 0
        %402 = vmatpush1.bf16.msra.mxu0 %v355
        %403 = vmatprep.subr.bf16.mxu0 0
        %404 = vmatpush1.bf16.msra.mxu0 %v356
        %405 = vmatprep.mubr.bf16.mxu0 %v244
        %406 = vmatmul.mubr.bf16.gmra.mrb[0].mxu0 %v243
        %v407 = vpop.f32.mrb[0].mxu0
        %v408 = vadd.f32 0.0, %v407
        %v409 = vpop.f32.mrb[0].mxu0
        %v410 = vpop.f32.mrb[0].mxu0
        %v411 = vpop.f32.mrb[0].mxu0
        %412 = vdwg.mxu0
        %v413 = vpack.c.bf16 %v408, %v408
        %v414 = vld [vmem:[#allocation2] sm:$0xff]
        %v415 = vld [vmem:[#allocation2 + $0x8] sm:$0xff]
        %v416 = vld [vmem:[#allocation2 + $0x10] sm:$0xff]
        %v417 = vld [vmem:[#allocation2 + $0x18] sm:$0xff]
        %v418 = vld [vmem:[#allocation2 + $0x20] sm:$0xff]
        %v419 = vld [vmem:[#allocation2 + $0x28] sm:$0xff]
        %v420 = vld [vmem:[#allocation2 + $0x30] sm:$0xff]
        %v421 = vld [vmem:[#allocation2 + $0x38] sm:$0xff]
        %v422 = vld [vmem:[#allocation2 + $0x40] sm:$0xff]
        %v423 = vld [vmem:[#allocation2 + $0x48] sm:$0xff]
        %v424 = vld [vmem:[#allocation2 + $0x50] sm:$0xff]
        %v425 = vld [vmem:[#allocation2 + $0x58] sm:$0xff]
        %v426 = vld [vmem:[#allocation2 + $0x60] sm:$0xff]
        %v427 = vld [vmem:[#allocation2 + $0x68] sm:$0xff]
        %v428 = vld [vmem:[%s2] sm:$0xf]
        %v429 = vld [vmem:[%s2 + $0x4] sm:$0xf]
        %v430 = vld [vmem:[%s2 + $0x8] sm:$0xf]
        %v431 = vld [vmem:[%s2 + $0xc] sm:$0xf]
        %v432 = vld [vmem:[%s2 + $0x10] sm:$0xf]
        %v433 = vld [vmem:[%s2 + $0x14] sm:$0xf]
        %v434 = vld [vmem:[%s2 + $0x18] sm:$0xf]
        %v435 = vld [vmem:[%s2 + $0x1c] sm:$0xf]
        %v436 = vld [vmem:[%s2 + $0x20] sm:$0xf]
        %v437 = vld [vmem:[%s2 + $0x24] sm:$0xf]
        %v438 = vld [vmem:[%s2 + $0x28] sm:$0xf]
        %v439 = vld [vmem:[%s2 + $0x2c] sm:$0xf]
        %v440 = vld [vmem:[%s2 + $0x30] sm:$0xf]
        %v441 = vld [vmem:[%s2 + $0x34] sm:$0xf]
        %v456 = vunpack.c.l.b16 %v428
        %v457 = vunpack.c.l.b16 %v429
        %v458 = vunpack.c.l.b16 %v430
        %v459 = vunpack.c.l.b16 %v431
        %v460 = vunpack.c.l.b16 %v432
        %v461 = vunpack.c.l.b16 %v433
        %v462 = vunpack.c.l.b16 %v434
        %v463 = vunpack.c.l.b16 %v435
        %v464 = vunpack.c.l.b16 %v436
        %v465 = vunpack.c.l.b16 %v437
        %v466 = vunpack.c.l.b16 %v438
        %v467 = vunpack.c.l.b16 %v439
        %v468 = vunpack.c.l.b16 %v440
        %v469 = vunpack.c.l.b16 %v441
        %v470 = vpack.c.b16 %v457, %v456
        %v471 = vpack.c.b16 %v459, %v458
        %v472 = vpack.c.b16 %v461, %v460
        %v473 = vpack.c.b16 %v463, %v462
        %v474 = vpack.c.b16 %v465, %v464
        %v475 = vpack.c.b16 %v467, %v466
        %v476 = vpack.c.b16 %v469, %v468
        %vm477 = vcmask 31744
        %v479 = vsel %vm477, %v470, 0
        %v482 = vsel %vm477, %v471, 0
        %v485 = vsel %vm477, %v472, 0
        %v488 = vsel %vm477, %v473, 0
        %v491 = vsel %vm477, %v474, 0
        %v494 = vsel %vm477, %v475, 0
        %v497 = vsel %vm477, %v476, 0
        %vm499 = vcmask 1041408
        %v501 = vsel %vm499, %v413, 0
        %503 = vmatprep.subr.bf16.mxu0 0
        %504 = vmatpush1.bf16.msra.mxu0 %v501
        %505 = vmatprep.subr.bf16.mxu0 0
        %506 = vmatpush1.bf16.msra.mxu0 0
        %507 = vmatprep.subr.bf16.mxu0 0
        %508 = vmatpush1.bf16.msra.mxu0 0
        %509 = vmatprep.subr.bf16.mxu0 0
        %510 = vmatpush1.bf16.msra.mxu0 0
        %511 = vmatprep.subr.bf16.mxu0 0
        %512 = vmatpush1.bf16.msra.mxu0 0
        %513 = vmatprep.subr.bf16.mxu0 0
        %514 = vmatpush1.bf16.msra.mxu0 0
        %515 = vmatprep.subr.bf16.mxu0 0
        %516 = vmatpush1.bf16.msra.mxu0 0
        %517 = vmatprep.subr.bf16.mxu0 0
        %518 = vmatpush1.bf16.msra.mxu0 0
        %519 = vmatprep.subr.bf16.mxu0 0
        %520 = vmatpush1.bf16.msra.mxu0 0
        %521 = vmatprep.subr.bf16.mxu0 0
        %522 = vmatpush1.bf16.msra.mxu0 0
        %523 = vmatprep.subr.bf16.mxu0 0
        %524 = vmatpush1.bf16.msra.mxu0 0
        %525 = vmatprep.subr.bf16.mxu0 0
        %526 = vmatpush1.bf16.msra.mxu0 0
        %527 = vmatprep.subr.bf16.mxu0 0
        %528 = vmatpush1.bf16.msra.mxu0 0
        %529 = vmatprep.subr.bf16.mxu0 0
        %530 = vmatpush1.bf16.msra.mxu0 0
        %531 = vmatprep.subr.bf16.mxu0 0
        %532 = vmatpush1.bf16.msra.mxu0 0
        %533 = vmatprep.subr.bf16.mxu0 0
        %534 = vmatpush1.bf16.msra.mxu0 0
        %535 = vmatprep.mubr.bf16.mxu0 0
        %536 = vmatmul.mubr.bf16.gmra.mrb[0].mxu0 %v479
        %v537 = vpop.f32.mrb[0].mxu0
        %v538 = vadd.f32 0.0, %v537
        %v539 = vpop.f32.mrb[0].mxu0
        %v540 = vpop.f32.mrb[0].mxu0
        %v541 = vadd.f32 0.0, %v540
        %v542 = vpop.f32.mrb[0].mxu0
        %543 = vmatprep.mubr.bf16.mxu0 0
        %544 = vmatmul.mubr.bf16.gmra.mrb[0].mxu0 %v482
        %v545 = vpop.f32.mrb[0].mxu0
        %v546 = vadd.f32 0.0, %v545
        %v547 = vpop.f32.mrb[0].mxu0
        %v548 = vpop.f32.mrb[0].mxu0
        %v549 = vadd.f32 0.0, %v548
        %v550 = vpop.f32.mrb[0].mxu0
        %551 = vmatprep.mubr.bf16.mxu0 0
        %552 = vmatmul.mubr.bf16.gmra.mrb[0].mxu0 %v485
        %v553 = vpop.f32.mrb[0].mxu0
        %v554 = vadd.f32 0.0, %v553
        %v555 = vpop.f32.mrb[0].mxu0
        %v556 = vpop.f32.mrb[0].mxu0
        %v557 = vadd.f32 0.0, %v556
        %v558 = vpop.f32.mrb[0].mxu0
        %559 = vmatprep.mubr.bf16.mxu0 0
        %560 = vmatmul.mubr.bf16.gmra.mrb[0].mxu0 %v488
        %v561 = vpop.f32.mrb[0].mxu0
        %v562 = vadd.f32 0.0, %v561
        %v563 = vpop.f32.mrb[0].mxu0
        %v564 = vpop.f32.mrb[0].mxu0
        %v565 = vadd.f32 0.0, %v564
        %v566 = vpop.f32.mrb[0].mxu0
        %567 = vmatprep.mubr.bf16.mxu0 0
        %568 = vmatmul.mubr.bf16.gmra.mrb[0].mxu0 %v491
        %v569 = vpop.f32.mrb[0].mxu0
        %v570 = vadd.f32 0.0, %v569
        %v571 = vpop.f32.mrb[0].mxu0
        %v572 = vpop.f32.mrb[0].mxu0
        %v573 = vadd.f32 0.0, %v572
        %v574 = vpop.f32.mrb[0].mxu0
        %575 = vmatprep.mubr.bf16.mxu0 0
        %576 = vmatmul.mubr.bf16.gmra.mrb[0].mxu0 %v494
        %v577 = vpop.f32.mrb[0].mxu0
        %v578 = vadd.f32 0.0, %v577
        %v579 = vpop.f32.mrb[0].mxu0
        %v580 = vpop.f32.mrb[0].mxu0
        %v581 = vadd.f32 0.0, %v580
        %v582 = vpop.f32.mrb[0].mxu0
        %583 = vmatprep.mubr.bf16.mxu0 0
        %584 = vmatmul.mubr.bf16.gmra.mrb[0].mxu0 %v497
        %v585 = vpop.f32.mrb[0].mxu0
        %v586 = vadd.f32 0.0, %v585
        %v587 = vpop.f32.mrb[0].mxu0
        %v588 = vpop.f32.mrb[0].mxu0
        %v589 = vadd.f32 0.0, %v588
        %v590 = vpop.f32.mrb[0].mxu0
        %591 = vdwg.mxu0
        %v592 = vld [vmem:[%s4] sm:$0x1]
        %v594 = vlaneseq
        %v595 = vshrl.u32 %v594, 7
        %v596 = vsub.s32 0, %v595
        %v597 = vrot.slane %v592, %v596
        %v599 = vmul.f32 %v538, %v597
        %v600 = vmul.f32 %v541, %v597
        %v601 = vmul.f32 %v546, %v597
        %v602 = vmul.f32 %v549, %v597
        %v603 = vmul.f32 %v554, %v597
        %v604 = vmul.f32 %v557, %v597
        %v605 = vmul.f32 %v562, %v597
        %v606 = vmul.f32 %v565, %v597
        %v607 = vmul.f32 %v570, %v597
        %v608 = vmul.f32 %v573, %v597
        %v609 = vmul.f32 %v578, %v597
        %v610 = vmul.f32 %v581, %v597
        %v611 = vmul.f32 %v586, %v597
        %v612 = vmul.f32 %v589, %v597
        %v613 = vadd.f32 %v414, %v599
        %v614 = vadd.f32 %v415, %v600
        %v615 = vadd.f32 %v416, %v601
        %v616 = vadd.f32 %v417, %v602
        %v617 = vadd.f32 %v418, %v603
        %v618 = vadd.f32 %v419, %v604
        %v619 = vadd.f32 %v420, %v605
        %v620 = vadd.f32 %v421, %v606
        %v621 = vadd.f32 %v422, %v607
        %v622 = vadd.f32 %v423, %v608
        %v623 = vadd.f32 %v424, %v609
        %v624 = vadd.f32 %v425, %v610
        %v625 = vadd.f32 %v426, %v611
        %v626 = vadd.f32 %v427, %v612
        %s627 = scalar_lea.vmem %s2, 56
        %v628 = vld [vmem:[%s627] sm:$0xf]
        %v629 = vld [vmem:[%s627 + $0x4] sm:$0xf]
        %v630 = vld [vmem:[%s627 + $0x8] sm:$0xf]
        %v631 = vld [vmem:[%s627 + $0xc] sm:$0xf]
        %v632 = vld [vmem:[%s627 + $0x10] sm:$0xf]
        %v633 = vld [vmem:[%s627 + $0x14] sm:$0xf]
        %v634 = vld [vmem:[%s627 + $0x18] sm:$0xf]
        %v635 = vld [vmem:[%s627 + $0x1c] sm:$0xf]
        %v636 = vld [vmem:[%s627 + $0x20] sm:$0xf]
        %v637 = vld [vmem:[%s627 + $0x24] sm:$0xf]
        %v638 = vld [vmem:[%s627 + $0x28] sm:$0xf]
        %v639 = vld [vmem:[%s627 + $0x2c] sm:$0xf]
        %v640 = vld [vmem:[%s627 + $0x30] sm:$0xf]
        %v641 = vld [vmem:[%s627 + $0x34] sm:$0xf]
        %v656 = vunpack.c.l.b16 %v628
        %v657 = vunpack.c.l.b16 %v629
        %v658 = vunpack.c.l.b16 %v630
        %v659 = vunpack.c.l.b16 %v631
        %v660 = vunpack.c.l.b16 %v632
        %v661 = vunpack.c.l.b16 %v633
        %v662 = vunpack.c.l.b16 %v634
        %v663 = vunpack.c.l.b16 %v635
        %v664 = vunpack.c.l.b16 %v636
        %v665 = vunpack.c.l.b16 %v637
        %v666 = vunpack.c.l.b16 %v638
        %v667 = vunpack.c.l.b16 %v639
        %v668 = vunpack.c.l.b16 %v640
        %v669 = vunpack.c.l.b16 %v641
        %v670 = vpack.c.b16 %v657, %v656
        %v671 = vpack.c.b16 %v659, %v658
        %v672 = vpack.c.b16 %v661, %v660
        %v673 = vpack.c.b16 %v663, %v662
        %v674 = vpack.c.b16 %v665, %v664
        %v675 = vpack.c.b16 %v667, %v666
        %v676 = vpack.c.b16 %v669, %v668
        %v678 = vsel %vm477, %v670, 0
        %v681 = vsel %vm477, %v671, 0
        %v684 = vsel %vm477, %v672, 0
        %v687 = vsel %vm477, %v673, 0
        %v690 = vsel %vm477, %v674, 0
        %v693 = vsel %vm477, %v675, 0
        %v696 = vsel %vm477, %v676, 0
        %698 = vmatprep.subr.bf16.mxu0 0
        %699 = vmatpush1.bf16.msra.mxu0 %v501
        %700 = vmatprep.subr.bf16.mxu0 0
        %701 = vmatpush1.bf16.msra.mxu0 0
        %702 = vmatprep.subr.bf16.mxu0 0
        %703 = vmatpush1.bf16.msra.mxu0 0
        %704 = vmatprep.subr.bf16.mxu0 0
        %705 = vmatpush1.bf16.msra.mxu0 0
        %706 = vmatprep.subr.bf16.mxu0 0
        %707 = vmatpush1.bf16.msra.mxu0 0
        %708 = vmatprep.subr.bf16.mxu0 0
        %709 = vmatpush1.bf16.msra.mxu0 0
        %710 = vmatprep.subr.bf16.mxu0 0
        %711 = vmatpush1.bf16.msra.mxu0 0
        %712 = vmatprep.subr.bf16.mxu0 0
        %713 = vmatpush1.bf16.msra.mxu0 0
        %714 = vmatprep.subr.bf16.mxu0 0
        %715 = vmatpush1.bf16.msra.mxu0 0
        %716 = vmatprep.subr.bf16.mxu0 0
        %717 = vmatpush1.bf16.msra.mxu0 0
        %718 = vmatprep.subr.bf16.mxu0 0
        %719 = vmatpush1.bf16.msra.mxu0 0
        %720 = vmatprep.subr.bf16.mxu0 0
        %721 = vmatpush1.bf16.msra.mxu0 0
        %722 = vmatprep.subr.bf16.mxu0 0
        %723 = vmatpush1.bf16.msra.mxu0 0
        %724 = vmatprep.subr.bf16.mxu0 0
        %725 = vmatpush1.bf16.msra.mxu0 0
        %726 = vmatprep.subr.bf16.mxu0 0
        %727 = vmatpush1.bf16.msra.mxu0 0
        %728 = vmatprep.subr.bf16.mxu0 0
        %729 = vmatpush1.bf16.msra.mxu0 0
        %730 = vmatprep.mubr.bf16.mxu0 0
        %731 = vmatmul.mubr.bf16.gmra.mrb[0].mxu0 %v678
        %v732 = vpop.f32.mrb[0].mxu0
        %v733 = vadd.f32 0.0, %v732
        %v734 = vpop.f32.mrb[0].mxu0
        %v735 = vpop.f32.mrb[0].mxu0
        %v736 = vadd.f32 0.0, %v735
        %v737 = vpop.f32.mrb[0].mxu0
        %738 = vmatprep.mubr.bf16.mxu0 0
        %739 = vmatmul.mubr.bf16.gmra.mrb[0].mxu0 %v681
        %v740 = vpop.f32.mrb[0].mxu0
        %v741 = vadd.f32 0.0, %v740
        %v742 = vpop.f32.mrb[0].mxu0
        %v743 = vpop.f32.mrb[0].mxu0
        %v744 = vadd.f32 0.0, %v743
        %v745 = vpop.f32.mrb[0].mxu0
        %746 = vmatprep.mubr.bf16.mxu0 0
        %747 = vmatmul.mubr.bf16.gmra.mrb[0].mxu0 %v684
        %v748 = vpop.f32.mrb[0].mxu0
        %v749 = vadd.f32 0.0, %v748
        %v750 = vpop.f32.mrb[0].mxu0
        %v751 = vpop.f32.mrb[0].mxu0
        %v752 = vadd.f32 0.0, %v751
        %v753 = vpop.f32.mrb[0].mxu0
        %754 = vmatprep.mubr.bf16.mxu0 0
        %755 = vmatmul.mubr.bf16.gmra.mrb[0].mxu0 %v687
        %v756 = vpop.f32.mrb[0].mxu0
        %v757 = vadd.f32 0.0, %v756
        %v758 = vpop.f32.mrb[0].mxu0
        %v759 = vpop.f32.mrb[0].mxu0
        %v760 = vadd.f32 0.0, %v759
        %v761 = vpop.f32.mrb[0].mxu0
        %762 = vmatprep.mubr.bf16.mxu0 0
        %763 = vmatmul.mubr.bf16.gmra.mrb[0].mxu0 %v690
        %v764 = vpop.f32.mrb[0].mxu0
        %v765 = vadd.f32 0.0, %v764
        %v766 = vpop.f32.mrb[0].mxu0
        %v767 = vpop.f32.mrb[0].mxu0
        %v768 = vadd.f32 0.0, %v767
        %v769 = vpop.f32.mrb[0].mxu0
        %770 = vmatprep.mubr.bf16.mxu0 0
        %771 = vmatmul.mubr.bf16.gmra.mrb[0].mxu0 %v693
        %v772 = vpop.f32.mrb[0].mxu0
        %v773 = vadd.f32 0.0, %v772
        %v774 = vpop.f32.mrb[0].mxu0
        %v775 = vpop.f32.mrb[0].mxu0
        %v776 = vadd.f32 0.0, %v775
        %v777 = vpop.f32.mrb[0].mxu0
        %778 = vmatprep.mubr.bf16.mxu0 0
        %779 = vmatmul.mubr.bf16.gmra.mrb[0].mxu0 %v696
        %v780 = vpop.f32.mrb[0].mxu0
        %v781 = vadd.f32 0.0, %v780
        %v782 = vpop.f32.mrb[0].mxu0
        %v783 = vpop.f32.mrb[0].mxu0
        %v784 = vadd.f32 0.0, %v783
        %v785 = vpop.f32.mrb[0].mxu0
        %786 = vdwg.mxu0
        %s787 = scalar_lea.vmem %s4, 1
        %v788 = vld [vmem:[%s787] sm:$0x1]
        %v790 = vlaneseq
        %v791 = vshrl.u32 %v790, 7
        %v792 = vsub.s32 0, %v791
        %v793 = vrot.slane %v788, %v792
        %v795 = vmul.f32 %v733, %v793
        %v796 = vmul.f32 %v736, %v793
        %v797 = vmul.f32 %v741, %v793
        %v798 = vmul.f32 %v744, %v793
        %v799 = vmul.f32 %v749, %v793
        %v800 = vmul.f32 %v752, %v793
        %v801 = vmul.f32 %v757, %v793
        %v802 = vmul.f32 %v760, %v793
        %v803 = vmul.f32 %v765, %v793
        %v804 = vmul.f32 %v768, %v793
        %v805 = vmul.f32 %v773, %v793
        %v806 = vmul.f32 %v776, %v793
        %v807 = vmul.f32 %v781, %v793
        %v808 = vmul.f32 %v784, %v793
        %v809 = vadd.f32 %v613, %v795
        %v810 = vadd.f32 %v614, %v796
        %v811 = vadd.f32 %v615, %v797
        %v812 = vadd.f32 %v616, %v798
        %v813 = vadd.f32 %v617, %v799
        %v814 = vadd.f32 %v618, %v800
        %v815 = vadd.f32 %v619, %v801
        %v816 = vadd.f32 %v620, %v802
        %v817 = vadd.f32 %v621, %v803
        %v818 = vadd.f32 %v622, %v804
        %v819 = vadd.f32 %v623, %v805
        %v820 = vadd.f32 %v624, %v806
        %v821 = vadd.f32 %v625, %v807
        %v822 = vadd.f32 %v626, %v808
        %s823 = scalar_lea.vmem %s2, 112
        %v824 = vld [vmem:[%s823] sm:$0xf]
        %v825 = vld [vmem:[%s823 + $0x4] sm:$0xf]
        %v826 = vld [vmem:[%s823 + $0x8] sm:$0xf]
        %v827 = vld [vmem:[%s823 + $0xc] sm:$0xf]
        %v828 = vld [vmem:[%s823 + $0x10] sm:$0xf]
        %v829 = vld [vmem:[%s823 + $0x14] sm:$0xf]
        %v830 = vld [vmem:[%s823 + $0x18] sm:$0xf]
        %v831 = vld [vmem:[%s823 + $0x1c] sm:$0xf]
        %v832 = vld [vmem:[%s823 + $0x20] sm:$0xf]
        %v833 = vld [vmem:[%s823 + $0x24] sm:$0xf]
        %v834 = vld [vmem:[%s823 + $0x28] sm:$0xf]
        %v835 = vld [vmem:[%s823 + $0x2c] sm:$0xf]
        %v836 = vld [vmem:[%s823 + $0x30] sm:$0xf]
        %v837 = vld [vmem:[%s823 + $0x34] sm:$0xf]
        %v852 = vunpack.c.l.b16 %v824
        %v853 = vunpack.c.l.b16 %v825
        %v854 = vunpack.c.l.b16 %v826
        %v855 = vunpack.c.l.b16 %v827
        %v856 = vunpack.c.l.b16 %v828
        %v857 = vunpack.c.l.b16 %v829
        %v858 = vunpack.c.l.b16 %v830
        %v859 = vunpack.c.l.b16 %v831
        %v860 = vunpack.c.l.b16 %v832
        %v861 = vunpack.c.l.b16 %v833
        %v862 = vunpack.c.l.b16 %v834
        %v863 = vunpack.c.l.b16 %v835
        %v864 = vunpack.c.l.b16 %v836
        %v865 = vunpack.c.l.b16 %v837
        %v866 = vpack.c.b16 %v853, %v852
        %v867 = vpack.c.b16 %v855, %v854
        %v868 = vpack.c.b16 %v857, %v856
        %v869 = vpack.c.b16 %v859, %v858
        %v870 = vpack.c.b16 %v861, %v860
        %v871 = vpack.c.b16 %v863, %v862
        %v872 = vpack.c.b16 %v865, %v864
        %v874 = vsel %vm477, %v866, 0
        %v877 = vsel %vm477, %v867, 0
        %v880 = vsel %vm477, %v868, 0
        %v883 = vsel %vm477, %v869, 0
        %v886 = vsel %vm477, %v870, 0
        %v889 = vsel %vm477, %v871, 0
        %v892 = vsel %vm477, %v872, 0
        %894 = vmatprep.subr.bf16.mxu0 0
        %895 = vmatpush1.bf16.msra.mxu0 %v501
        %896 = vmatprep.subr.bf16.mxu0 0
        %897 = vmatpush1.bf16.msra.mxu0 0
        %898 = vmatprep.subr.bf16.mxu0 0
        %899 = vmatpush1.bf16.msra.mxu0 0
        %900 = vmatprep.subr.bf16.mxu0 0
        %901 = vmatpush1.bf16.msra.mxu0 0
        %902 = vmatprep.subr.bf16.mxu0 0
        %903 = vmatpush1.bf16.msra.mxu0 0
        %904 = vmatprep.subr.bf16.mxu0 0
        %905 = vmatpush1.bf16.msra.mxu0 0
        %906 = vmatprep.subr.bf16.mxu0 0
        %907 = vmatpush1.bf16.msra.mxu0 0
        %908 = vmatprep.subr.bf16.mxu0 0
        %909 = vmatpush1.bf16.msra.mxu0 0
        %910 = vmatprep.subr.bf16.mxu0 0
        %911 = vmatpush1.bf16.msra.mxu0 0
        %912 = vmatprep.subr.bf16.mxu0 0
        %913 = vmatpush1.bf16.msra.mxu0 0
        %914 = vmatprep.subr.bf16.mxu0 0
        %915 = vmatpush1.bf16.msra.mxu0 0
        %916 = vmatprep.subr.bf16.mxu0 0
        %917 = vmatpush1.bf16.msra.mxu0 0
        %918 = vmatprep.subr.bf16.mxu0 0
        %919 = vmatpush1.bf16.msra.mxu0 0
        %920 = vmatprep.subr.bf16.mxu0 0
        %921 = vmatpush1.bf16.msra.mxu0 0
        %922 = vmatprep.subr.bf16.mxu0 0
        %923 = vmatpush1.bf16.msra.mxu0 0
        %924 = vmatprep.subr.bf16.mxu0 0
        %925 = vmatpush1.bf16.msra.mxu0 0
        %926 = vmatprep.mubr.bf16.mxu0 0
        %927 = vmatmul.mubr.bf16.gmra.mrb[0].mxu0 %v874
        %v928 = vpop.f32.mrb[0].mxu0
        %v929 = vadd.f32 0.0, %v928
        %v930 = vpop.f32.mrb[0].mxu0
        %v931 = vpop.f32.mrb[0].mxu0
        %v932 = vadd.f32 0.0, %v931
        %v933 = vpop.f32.mrb[0].mxu0
        %934 = vmatprep.mubr.bf16.mxu0 0
        %935 = vmatmul.mubr.bf16.gmra.mrb[0].mxu0 %v877
        %v936 = vpop.f32.mrb[0].mxu0
        %v937 = vadd.f32 0.0, %v936
        %v938 = vpop.f32.mrb[0].mxu0
        %v939 = vpop.f32.mrb[0].mxu0
        %v940 = vadd.f32 0.0, %v939
        %v941 = vpop.f32.mrb[0].mxu0
        %942 = vmatprep.mubr.bf16.mxu0 0
        %943 = vmatmul.mubr.bf16.gmra.mrb[0].mxu0 %v880
        %v944 = vpop.f32.mrb[0].mxu0
        %v945 = vadd.f32 0.0, %v944
        %v946 = vpop.f32.mrb[0].mxu0
        %v947 = vpop.f32.mrb[0].mxu0
        %v948 = vadd.f32 0.0, %v947
        %v949 = vpop.f32.mrb[0].mxu0
        %950 = vmatprep.mubr.bf16.mxu0 0
        %951 = vmatmul.mubr.bf16.gmra.mrb[0].mxu0 %v883
        %v952 = vpop.f32.mrb[0].mxu0
        %v953 = vadd.f32 0.0, %v952
        %v954 = vpop.f32.mrb[0].mxu0
        %v955 = vpop.f32.mrb[0].mxu0
        %v956 = vadd.f32 0.0, %v955
        %v957 = vpop.f32.mrb[0].mxu0
        %958 = vmatprep.mubr.bf16.mxu0 0
        %959 = vmatmul.mubr.bf16.gmra.mrb[0].mxu0 %v886
        %v960 = vpop.f32.mrb[0].mxu0
        %v961 = vadd.f32 0.0, %v960
        %v962 = vpop.f32.mrb[0].mxu0
        %v963 = vpop.f32.mrb[0].mxu0
        %v964 = vadd.f32 0.0, %v963
        %v965 = vpop.f32.mrb[0].mxu0
        %966 = vmatprep.mubr.bf16.mxu0 0
        %967 = vmatmul.mubr.bf16.gmra.mrb[0].mxu0 %v889
        %v968 = vpop.f32.mrb[0].mxu0
        %v969 = vadd.f32 0.0, %v968
        %v970 = vpop.f32.mrb[0].mxu0
        %v971 = vpop.f32.mrb[0].mxu0
        %v972 = vadd.f32 0.0, %v971
        %v973 = vpop.f32.mrb[0].mxu0
        %974 = vmatprep.mubr.bf16.mxu0 0
        %975 = vmatmul.mubr.bf16.gmra.mrb[0].mxu0 %v892
        %v976 = vpop.f32.mrb[0].mxu0
        %v977 = vadd.f32 0.0, %v976
        %v978 = vpop.f32.mrb[0].mxu0
        %v979 = vpop.f32.mrb[0].mxu0
        %v980 = vadd.f32 0.0, %v979
        %v981 = vpop.f32.mrb[0].mxu0
        %982 = vdwg.mxu0
        %s983 = scalar_lea.vmem %s4, 2
        %v984 = vld [vmem:[%s983] sm:$0x1]
        %v986 = vlaneseq
        %v987 = vshrl.u32 %v986, 7
        %v988 = vsub.s32 0, %v987
        %v989 = vrot.slane %v984, %v988
        %v991 = vmul.f32 %v929, %v989
        %v992 = vmul.f32 %v932, %v989
        %v993 = vmul.f32 %v937, %v989
        %v994 = vmul.f32 %v940, %v989
        %v995 = vmul.f32 %v945, %v989
        %v996 = vmul.f32 %v948, %v989
        %v997 = vmul.f32 %v953, %v989
        %v998 = vmul.f32 %v956, %v989
        %v999 = vmul.f32 %v961, %v989
        %v1000 = vmul.f32 %v964, %v989
        %v1001 = vmul.f32 %v969, %v989
        %v1002 = vmul.f32 %v972, %v989
        %v1003 = vmul.f32 %v977, %v989
        %v1004 = vmul.f32 %v980, %v989
        %v1005 = vadd.f32 %v809, %v991
        %v1006 = vadd.f32 %v810, %v992
        %v1007 = vadd.f32 %v811, %v993
        %v1008 = vadd.f32 %v812, %v994
        %v1009 = vadd.f32 %v813, %v995
        %v1010 = vadd.f32 %v814, %v996
        %v1011 = vadd.f32 %v815, %v997
        %v1012 = vadd.f32 %v816, %v998
        %v1013 = vadd.f32 %v817, %v999
        %v1014 = vadd.f32 %v818, %v1000
        %v1015 = vadd.f32 %v819, %v1001
        %v1016 = vadd.f32 %v820, %v1002
        %v1017 = vadd.f32 %v821, %v1003
        %v1018 = vadd.f32 %v822, %v1004
        %1019 = vst [vmem:[%s232] sm:$0xff] %v1005
        %1020 = vst [vmem:[%s232 + $0x8] sm:$0xff] %v1006
        %1021 = vst [vmem:[%s232 + $0x10] sm:$0xff] %v1007
        %1022 = vst [vmem:[%s232 + $0x18] sm:$0xff] %v1008
        %1023 = vst [vmem:[%s232 + $0x20] sm:$0xff] %v1009
        %1024 = vst [vmem:[%s232 + $0x28] sm:$0xff] %v1010
        %1025 = vst [vmem:[%s232 + $0x30] sm:$0xff] %v1011
        %1026 = vst [vmem:[%s232 + $0x38] sm:$0xff] %v1012
        %1027 = vst [vmem:[%s232 + $0x40] sm:$0xff] %v1013
        %1028 = vst [vmem:[%s232 + $0x48] sm:$0xff] %v1014
        %1029 = vst [vmem:[%s232 + $0x50] sm:$0xff] %v1015
        %1030 = vst [vmem:[%s232 + $0x58] sm:$0xff] %v1016
        %1031 = vst [vmem:[%s232 + $0x60] sm:$0xff] %v1017
        %1032 = vst [vmem:[%s232 + $0x68] sm:$0xff] %v1018
        %s1033 = sand.u32 %s138, 1
        %s1034 = scalar_lea.sflag [#allocation4], %s1033
        %s1035 = sand.u32 %s138, 1
        %s1036 = smul.addr %s1035, 112
        %s1037 = scalar_lea.vmem [#allocation5], %s1036
        // Predicated region
        $region45: #{tpu_custom_call.1} parent=39 // pred_check
          %p1038 = pneg %p148
        $region46: #{tpu_custom_call.1} parent=39 // pred_check_branch
          %1040 = sbr.rel (%p1038) target = $region48
        $region47: #{tpu_custom_call.1} parent=39 // pred_region
          %s1042 = ssub.s32 1792, 1792
          %1043 = vsyncadd %s1034, %s1042
          %s1044 = smul.addr %s20, 14
          %s1045 = smul.addr %s1044, 128
          %s1046 = scalar_lea.hbm %s5, %s1045
          %s1047 = sshll.u32 %s1037, 4
          %s1048 = int_to_ptr.vmem [resolvable:$true] %s1047
          %1053 = dma.vmem_to_hbm [thread:$0]  %s1048, 1792, %s1046, %s1034, 128, 128, 8
        $region48: #{tpu_custom_call.1} parent=39 // pred_fallthru
          _
      $region40: #{tpu_custom_call.1} parent=5 // pred_fallthru
        _
      %p1054 = scmp.le.s32.totalorder 2, %s15
      // Predicated region
      $region49: #{tpu_custom_call.1} parent=5 // pred_check
        %p1055 = pneg %p1054
      $region50: #{tpu_custom_call.1} parent=5 // pred_check_branch
        %1057 = sbr.rel (%p1055) target = $region52
      $region51: #{tpu_custom_call.1} parent=5 // pred_region
        %s1058 = ssub.s32 %s15, 2
        // Predicated region
        $region53: #{tpu_custom_call.1} parent=51 // pred_check
          %p1059 = pneg %p154
        $region54: #{tpu_custom_call.1} parent=51 // pred_check_branch
          %1061 = sbr.rel (%p1059) target = $region56
        $region55: #{tpu_custom_call.1} parent=51 // pred_region
          %s1062 = sand.u32 %s139, 1
          %s1063 = scalar_lea.sflag [#allocation4], %s1062
          %s1064 = sand.u32 %s139, 1
          %s1065 = smul.addr %s1064, 112
          %s1066 = scalar_lea.vmem [#allocation5], %s1065
          %1067 = dma.done %s1063, 1792
        $region56: #{tpu_custom_call.1} parent=51 // pred_fallthru
          _
      $region52: #{tpu_custom_call.1} parent=5 // pred_fallthru
        _
    $region6: #{tpu_custom_call.1} parent=1 // loop_footer
      %s19 = sadd.s32 1, %s15
    $region7: #{tpu_custom_call.1} parent=1 // loop_footer_branch
      %14 = sbr.rel target = $region3
    $region8: #{tpu_custom_call.1} parent=1 // loop_exit
      _
    %1068 = vsyncpa [#allocation3], 1
    %s1069 = scalar_lea.sflag [#allocation3], 1
    %1070 = vsyncpa %s1069, 1
    %1071 = vsyncpa [#allocation4], 1
    %s1072 = scalar_lea.sflag [#allocation4], 1
    %1073 = vsyncpa %s1072, 1

</llo_original>
